<compile_context>
chip_gen: v7x
topology: tpu7x:2x2x1
jax: 0.10.0
libtpu: 0.0.40
codegen_flags: <defaults>
</compile_context>

<pallas_src>
import functools

import jax
import jax.numpy as jnp
from jax.experimental import pallas as pl
from jax.experimental.pallas import tpu as pltpu


def _round_up(x, m):
    return ((x + m - 1) // m) * m


def _pad_to(a, shape, dtype):
    """Zero-pad `a` up to `shape` (no copy if already that shape) and cast."""
    if tuple(a.shape) == tuple(shape):
        return a.astype(dtype)
    out = jnp.zeros(shape, a.dtype)
    out = out.at[tuple(slice(0, s) for s in a.shape)].set(a)
    return out.astype(dtype)


def _chip_kind():
    try:
        return jax.devices()[0].device_kind.lower()
    except Exception:
        return ""


def _vmem_capacity_bytes():
    try:
        return int(pltpu.get_tpu_info().vmem_capacity_bytes)
    except Exception:
        return 64 << 20  # conservative default (v7x per-TC VMEM)


def _mu_sigma_kernel(x_ref, w1_ref, b1_ref, w2_ref, b2_ref, out_ref, *, sigma_start):
    # Layer 1: MXU matmul with f32 accumulation; f32 tanh on the EUP.
    h = jnp.tanh(
        jnp.dot(x_ref[...], w1_ref[...], preferred_element_type=jnp.float32)
        + b1_ref[...]
    )
    # Layer 2: cast h to the weight dtype so bf16 inputs stay on the fast MXU path;
    # accumulation stays f32.
    out = (
        jnp.dot(h.astype(w2_ref.dtype), w2_ref[...], preferred_element_type=jnp.float32)
        + b2_ref[...]
    )
    # Lanes [0, sigma_start) are mu, [sigma_start, 2*sigma_start) are log_sigma -> exp,
    # the rest is padding.  Split at the largest 128-aligned boundary <= sigma_start so
    # every store is a full, unmasked, lane-aligned vst and exp only runs on the tail.
    sig_lo = (sigma_start // 128) * 128
    if sig_lo > 0:
        out_ref[:, :sig_lo] = out[:, :sig_lo]              # pure-mu lanes: no exp at all
    tail = out[:, sig_lo:]
    if sigma_start % 128 == 0:
        tail = jnp.exp(tail)                               # aligned split: no mask needed
    else:
        lane = jax.lax.broadcasted_iota(jnp.int32, tail.shape, 1) + sig_lo
        tail = jnp.where(lane >= sigma_start, jnp.exp(tail), tail)
    out_ref[:, sig_lo:] = tail


def mu_sigma_ffnn(x, w1, b1, w2, b2, *, block_b=None, use_bf16_matmul=None):
    """x: [B, input_dim]; w1: [input_dim, hidden_dim]; b1: [hidden_dim] or [1, hidden_dim];
    w2: [hidden_dim, 2*output_dim]; b2: [2*output_dim] or [1, 2*output_dim].
    Returns (mu [B, output_dim], sigma [B, output_dim]) in float32.
    use_bf16_matmul=None -> bf16 MXU inputs on v6e/v7x, f32 elsewhere."""
    B, input_dim = x.shape
    hidden_dim = w1.shape[1]
    two_out = w2.shape[1]
    assert two_out % 2 == 0
    output_dim = two_out // 2

    b1 = b1.reshape(1, hidden_dim)
    b2 = b2.reshape(1, two_out)

    kind = _chip_kind()
    two_tc = "v7" in kind
    if use_bf16_matmul is None:
        use_bf16_matmul = ("v6" in kind) or ("v7" in kind)
    mm_dtype = jnp.bfloat16 if use_bf16_matmul else jnp.float32
    mm_bytes = jnp.dtype(mm_dtype).itemsize

    # ---- feature padding (weights only; x keeps its native feature width) -----------
    hid_pad = _round_up(hidden_dim, 128)
    W = _round_up(two_out, 128)        # fused mu|log_sigma slab, padded once (contiguous)
    sigma_start = output_dim           # lanes [0,out)=mu, [out,2*out)=log_sigma, rest pad

    # TODO(synk): weight padding/casting is call-invariant; hoist it to module init (or
    # jit the wrapper) so it is not re-materialized per call in a training loop.
    w1_p = _pad_to(w1, (input_dim, hid_pad), mm_dtype)
    b1_p = _pad_to(b1, (1, hid_pad), jnp.float32)
    w2_p = _pad_to(w2, (hid_pad, W), mm_dtype)
    b2_p = _pad_to(b2, (1, W), jnp.float32)

    # ---- batch tiling: multiple of 8 sublanes; generation-aware step count ----------
    if block_b is None:
        if two_tc and B >= 512:
            # v7x: even number of steps (both TCs busy every pair), >=256 rows per step.
            steps = max(2, 2 * pl.cdiv(B, 2 * 512))
            block_b = max(256, _round_up(pl.cdiv(B, steps), 8))
        else:
            # Single TC (v5e/v6e): one big tile when it fits; extra steps only cost
            # ~0.35us fill/drain each with no parallelism to gain.
            block_b = _round_up(min(B, 1024), 8)
    block_b = max(8, _round_up(block_b, 8))
    B_pad = _round_up(B, block_b)
    grid_steps = B_pad // block_b

    x_p = x.astype(mm_dtype)
    if B_pad != B:  # pad batch only (same feature width; no 4x-wide HBM copy of x)
        x_p = jnp.zeros((B_pad, input_dim), mm_dtype).at[:B].set(x_p)

    # ---- VMEM budget: no double counting, generation-aware clamp --------------------
    io_buf = 2 if grid_steps > 1 else 1
    x_tile_bytes = block_b * input_dim * mm_bytes
    out_tile_bytes = block_b * W * 4
    weight_bytes = (input_dim * hid_pad + hid_pad * W) * mm_bytes + (hid_pad + W) * 4
    interm_bytes = block_b * (hid_pad + W) * 4            # h and layer-2 f32 result
    # Budget assuming the worst case (double-buffered weights on the fallback path).
    footprint = io_buf * (x_tile_bytes + out_tile_bytes) + 2 * weight_bytes + interm_bytes
    cap = _vmem_capacity_bytes()
    vmem_limit = int(min(max(footprint + (4 << 20), 16 << 20), int(0.9 * cap)))
    # TODO(synk): if resident W1+W2 approach ~40-48 MiB (hidden/input >= ~2K f32 on v7x's
    # 64 MiB VMEM), add a trailing "arbitrary" K grid axis with an f32 VMEM accumulator
    # instead of keeping the full weights resident.

    # ---- cost hint for the XLA scheduler ---------------------------------------------
    sig_lo = (sigma_start // 128) * 128
    flops = 2 * B_pad * (input_dim * hid_pad + hid_pad * W)
    transcendentals = B_pad * (hid_pad + (W - sig_lo))    # tanh + exp (EUP-bound regime)
    bytes_accessed = (B_pad * input_dim * mm_bytes + B_pad * W * 4
                      + (input_dim * hid_pad + hid_pad * W) * mm_bytes + (hid_pad + W) * 4)
    cost = pl.CostEstimate(flops=int(flops), transcendentals=int(transcendentals),
                           bytes_accessed=int(bytes_accessed))

    kernel = functools.partial(_mu_sigma_kernel, sigma_start=sigma_start)
    out_spec = pl.BlockSpec((block_b, W), lambda i: (i, 0))
    out_shape = jax.ShapeDtypeStruct((B_pad, W), jnp.float32)
    compiler_params = pltpu.CompilerParams(
        dimension_semantics=("parallel",),
        vmem_limit_bytes=vmem_limit,
    )

    def _forward(x_in, w1_in, weight_kwargs):
        k_dim = x_in.shape[1]
        in_specs = [
            pl.BlockSpec((block_b, k_dim), lambda i: (i, 0)),                 # x: batch tiled
            pl.BlockSpec((k_dim, hid_pad), lambda i: (0, 0), **weight_kwargs),   # W1 resident
            pl.BlockSpec((1, hid_pad), lambda i: (0, 0), **weight_kwargs),       # b1 resident
            pl.BlockSpec((hid_pad, W), lambda i: (0, 0), **weight_kwargs),       # W2 resident
            pl.BlockSpec((1, W), lambda i: (0, 0), **weight_kwargs),             # b2 resident
        ]
        return pl.pallas_call(
            kernel,
            grid=(grid_steps,),
            in_specs=in_specs,
            out_specs=out_spec,
            out_shape=out_shape,
            compiler_params=compiler_params,
            cost_estimate=cost,
        )(x_in, w1_in, b1_p, w2_p, b2_p)

    # Preferred path first; fall back gracefully so the kernel always runs.
    attempts = []
    if hasattr(pl, "Buffered"):
        # Grid-invariant weights never re-fetch; single-buffering halves their VMEM.
        attempts.append(lambda: _forward(x_p, w1_p, {"pipeline_mode": pl.Buffered(1)}))
    attempts.append(lambda: _forward(x_p, w1_p, {}))
    if input_dim % 128 != 0:
        def _padded_k():
            # Last resort (only if the unaligned-K matmul is rejected): lane-pad K in HBM.
            in_pad = _round_up(input_dim, 128)
            xk = jnp.zeros((B_pad, in_pad), mm_dtype).at[:, :input_dim].set(x_p)
            w1k = jnp.zeros((in_pad, hid_pad), mm_dtype).at[:input_dim].set(w1_p)
            return _forward(xk, w1k, {})
        attempts.append(_padded_k)

    fused = None
    err = None
    for attempt in attempts:
        try:
            fused = attempt()
            break
        except Exception as e:  # fallback path only
            err = e
    if fused is None:
        raise err

    # Cheap layout plumbing outside the kernel: slice the fused lane-dense slab.
    mu = fused[:B, :output_dim]
    sigma = fused[:B, output_dim:two_out]
    return mu, sigma


if __name__ == "__main__":
    # Small, module-consistent shapes.
    B = 8
    input_dim = 32
    hidden_dim = 32
    output_dim = 16  # Ffnn internal output width = 2 * output_dim = 32

    key = jax.random.PRNGKey(0)
    kx, k1, kb1, k2, kb2 = jax.random.split(key, 5)

    x = jax.random.normal(kx, (B, input_dim), dtype=jnp.float32)
    w1 = jax.random.normal(k1, (input_dim, hidden_dim), dtype=jnp.float32) * 0.1
    b1 = jax.random.normal(kb1, (1, hidden_dim), dtype=jnp.float32) * 0.1
    w2 = jax.random.normal(k2, (hidden_dim, 2 * output_dim), dtype=jnp.float32) * 0.1
    b2 = jax.random.normal(kb2, (1, 2 * output_dim), dtype=jnp.float32) * 0.1

    # Pure-JAX reference.
    h_ref = jnp.tanh(x @ w1 + b1)
    ref_out = h_ref @ w2 + b2
    mu_ref = ref_out[:, :output_dim]
    sigma_ref = jnp.exp(ref_out[:, output_dim:])

    # Exact f32 path: bit-parity with the f32 PyTorch module.
    mu, sigma = mu_sigma_ffnn(x, w1, b1, w2, b2, use_bf16_matmul=False)
    jax.block_until_ready((mu, sigma))
    assert mu.shape == (B, output_dim) and sigma.shape == (B, output_dim)
    assert jnp.allclose(mu, mu_ref, atol=1e-5, rtol=1e-5)
    assert jnp.allclose(sigma, sigma_ref, atol=1e-5, rtol=1e-5)
    assert bool(jnp.all(sigma >= 0.0))

    # Auto path (bf16 MXU inputs on v6e/v7x, f32 elsewhere): looser tolerance.
    mu_a, sigma_a = mu_sigma_ffnn(x, w1, b1, w2, b2)
    jax.block_until_ready((mu_a, sigma_a))
    assert jnp.allclose(mu_a, mu_ref, atol=5e-2, rtol=5e-2)
    assert jnp.allclose(sigma_a, sigma_ref, atol=5e-2, rtol=5e-2)
    assert bool(jnp.all(sigma_a >= 0.0))

    print("KERNEL_OK")
</pallas_src>

<mosaic_0001>
module attributes {stable_mosaic.version = 11 : i64} {
  func.func @_mu_sigma_kernel(%arg0: i32, %arg1: memref<8x32xf32, #tpu.memory_space<vmem>>, %arg2: memref<32x128xf32, #tpu.memory_space<vmem>>, %arg3: memref<1x128xf32, #tpu.memory_space<vmem>>, %arg4: memref<128x128xf32, #tpu.memory_space<vmem>>, %arg5: memref<1x128xf32, #tpu.memory_space<vmem>>, %arg6: memref<8x128xf32, #tpu.memory_space<vmem>>) attributes {dimension_semantics = [#tpu.dimension_semantics<parallel>], iteration_bounds = array<i64: 1>, scalar_prefetch = 0 : i64, scratch_operands = 0 : i64, tpu.core_type = #tpu.core_type<tc>, window_params = [{transform_indices = @transform_0, window_bounds = array<i64: 8, 32>}, {pipeline_mode = #tpu.pipeline_mode<synchronous>, transform_indices = @transform_1, window_bounds = array<i64: 32, 128>}, {pipeline_mode = #tpu.pipeline_mode<synchronous>, transform_indices = @transform_2, window_bounds = array<i64: 1, 128>}, {pipeline_mode = #tpu.pipeline_mode<synchronous>, transform_indices = @transform_3, window_bounds = array<i64: 128, 128>}, {pipeline_mode = #tpu.pipeline_mode<synchronous>, transform_indices = @transform_4, window_bounds = array<i64: 1, 128>}, {transform_indices = @transform_5, window_bounds = array<i64: 8, 128>}]} {
    %c0 = arith.constant 0 : index
    %c0_0 = arith.constant 0 : index
    %0 = vector.load %arg1[%c0, %c0_0] : memref<8x32xf32, #tpu.memory_space<vmem>>, vector<8x32xf32>
    %c0_1 = arith.constant 0 : index
    %c0_2 = arith.constant 0 : index
    %1 = vector.load %arg2[%c0_1, %c0_2] : memref<32x128xf32, #tpu.memory_space<vmem>>, vector<32x128xf32>
    %cst = arith.constant dense<0.000000e+00> : vector<8x128xf32>
    %2 = tpu.matmul %0, %1, %cst {dimension_numbers = #tpu.dot_dimension_numbers<[1], [0], [0], [1], [0, 0, 1, 1], [], []>} : vector<8x32xf32>, vector<32x128xf32>, vector<8x128xf32> -> vector<8x128xf32>
    %c0_3 = arith.constant 0 : index
    %c0_4 = arith.constant 0 : index
    %3 = vector.load %arg3[%c0_3, %c0_4] : memref<1x128xf32, #tpu.memory_space<vmem>>, vector<1x128xf32>
    %4 = vector.broadcast %3 : vector<1x128xf32> to vector<8x128xf32>
    %5 = arith.addf %2, %4 : vector<8x128xf32>
    %6 = math.tanh %5 : vector<8x128xf32>
    %c0_5 = arith.constant 0 : index
    %c0_6 = arith.constant 0 : index
    %7 = vector.load %arg4[%c0_5, %c0_6] : memref<128x128xf32, #tpu.memory_space<vmem>>, vector<128x128xf32>
    %cst_7 = arith.constant dense<0.000000e+00> : vector<8x128xf32>
    %8 = tpu.matmul %6, %7, %cst_7 {dimension_numbers = #tpu.dot_dimension_numbers<[1], [0], [0], [1], [0, 0, 1, 1], [], []>} : vector<8x128xf32>, vector<128x128xf32>, vector<8x128xf32> -> vector<8x128xf32>
    %c0_8 = arith.constant 0 : index
    %c0_9 = arith.constant 0 : index
    %9 = vector.load %arg5[%c0_8, %c0_9] : memref<1x128xf32, #tpu.memory_space<vmem>>, vector<1x128xf32>
    %10 = vector.broadcast %9 : vector<1x128xf32> to vector<8x128xf32>
    %11 = arith.addf %8, %10 : vector<8x128xf32>
    %12 = tpu.iota {dimensions = array<i32: 1>} : vector<8x128xi32>
    %c0_i32 = arith.constant 0 : i32
    %13 = vector.broadcast %c0_i32 : i32 to vector<8x128xi32>
    %14 = arith.addi %12, %13 : vector<8x128xi32>
    %c16_i32 = arith.constant 16 : i32
    %15 = vector.broadcast %c16_i32 : i32 to vector<8x128xi32>
    %16 = arith.cmpi sge, %14, %15 : vector<8x128xi32>
    %17 = math.exp %11 : vector<8x128xf32>
    %18 = arith.select %16, %17, %11 : vector<8x128xi1>, vector<8x128xf32>
    %c0_10 = arith.constant 0 : index
    %c0_11 = arith.constant 0 : index
    %19 = vector.load %arg6[%c0_10, %c0_11] : memref<8x128xf32, #tpu.memory_space<vmem>>, vector<8x128xf32>
    tpu.vector_store %arg6[%c0_10, %c0_11], %18 {strides = array<i32>} : memref<8x128xf32, #tpu.memory_space<vmem>>, vector<8x128xf32>,
    return
  }
  func.func @transform_0(%arg0: i32) -> (i32, i32) {
    %c0_i32 = arith.constant 0 : i32
    %c0_i32_0 = arith.constant 0 : i32
    return %arg0, %c0_i32 : i32, i32
  }
  func.func @transform_1(%arg0: i32) -> (i32, i32) {
    %c0_i32 = arith.constant 0 : i32
    %c0_i32_0 = arith.constant 0 : i32
    %c0_i32_1 = arith.constant 0 : i32
    return %c0_i32, %c0_i32_0 : i32, i32
  }
  func.func @transform_2(%arg0: i32) -> (i32, i32) {
    %c0_i32 = arith.constant 0 : i32
    %c0_i32_0 = arith.constant 0 : i32
    %c0_i32_1 = arith.constant 0 : i32
    return %c0_i32, %c0_i32_0 : i32, i32
  }
  func.func @transform_3(%arg0: i32) -> (i32, i32) {
    %c0_i32 = arith.constant 0 : i32
    %c0_i32_0 = arith.constant 0 : i32
    %c0_i32_1 = arith.constant 0 : i32
    return %c0_i32, %c0_i32_0 : i32, i32
  }
  func.func @transform_4(%arg0: i32) -> (i32, i32) {
    %c0_i32 = arith.constant 0 : i32
    %c0_i32_0 = arith.constant 0 : i32
    %c0_i32_1 = arith.constant 0 : i32
    return %c0_i32, %c0_i32_0 : i32, i32
  }
  func.func @transform_5(%arg0: i32) -> (i32, i32) {
    %c0_i32 = arith.constant 0 : i32
    %c0_i32_0 = arith.constant 0 : i32
    return %arg0, %c0_i32 : i32, i32
  }
}

module attributes {stable_mosaic.version = 11 : i64} {
  func.func @_mu_sigma_kernel(%arg0: i32, %arg1: memref<8x32xf32, #tpu.memory_space<vmem>>, %arg2: memref<32x128xf32, #tpu.memory_space<vmem>>, %arg3: memref<1x128xf32, #tpu.memory_space<vmem>>, %arg4: memref<128x128xf32, #tpu.memory_space<vmem>>, %arg5: memref<1x128xf32, #tpu.memory_space<vmem>>, %arg6: memref<8x128xf32, #tpu.memory_space<vmem>>) attributes {dimension_semantics = [#tpu.dimension_semantics<parallel>], iteration_bounds = array<i64: 1>, scalar_prefetch = 0 : i64, scratch_operands = 0 : i64, tpu.core_type = #tpu.core_type<tc>, window_params = [{transform_indices = @transform_0, window_bounds = array<i64: 8, 32>}, {pipeline_mode = #tpu.pipeline_mode<synchronous>, transform_indices = @transform_1, window_bounds = array<i64: 32, 128>}, {pipeline_mode = #tpu.pipeline_mode<synchronous>, transform_indices = @transform_2, window_bounds = array<i64: 1, 128>}, {pipeline_mode = #tpu.pipeline_mode<synchronous>, transform_indices = @transform_3, window_bounds = array<i64: 128, 128>}, {pipeline_mode = #tpu.pipeline_mode<synchronous>, transform_indices = @transform_4, window_bounds = array<i64: 1, 128>}, {transform_indices = @transform_5, window_bounds = array<i64: 8, 128>}]} {
    %c0 = arith.constant 0 : index
    %c0_0 = arith.constant 0 : index
    %0 = vector.load %arg1[%c0, %c0_0] : memref<8x32xf32, #tpu.memory_space<vmem>>, vector<8x32xf32>
    %c0_1 = arith.constant 0 : index
    %c0_2 = arith.constant 0 : index
    %1 = vector.load %arg2[%c0_1, %c0_2] : memref<32x128xf32, #tpu.memory_space<vmem>>, vector<32x128xf32>
    %cst = arith.constant dense<0.000000e+00> : vector<8x128xf32>
    %2 = tpu.matmul %0, %1, %cst {dimension_numbers = #tpu.dot_dimension_numbers<[1], [0], [0], [1], [0, 0, 1, 1], [], []>} : vector<8x32xf32>, vector<32x128xf32>, vector<8x128xf32> -> vector<8x128xf32>
    %c0_3 = arith.constant 0 : index
    %c0_4 = arith.constant 0 : index
    %3 = vector.load %arg3[%c0_3, %c0_4] : memref<1x128xf32, #tpu.memory_space<vmem>>, vector<1x128xf32>
    %4 = vector.broadcast %3 : vector<1x128xf32> to vector<8x128xf32>
    %5 = arith.addf %2, %4 : vector<8x128xf32>
    %6 = math.tanh %5 : vector<8x128xf32>
    %c0_5 = arith.constant 0 : index
    %c0_6 = arith.constant 0 : index
    %7 = vector.load %arg4[%c0_5, %c0_6] : memref<128x128xf32, #tpu.memory_space<vmem>>, vector<128x128xf32>
    %cst_7 = arith.constant dense<0.000000e+00> : vector<8x128xf32>
    %8 = tpu.matmul %6, %7, %cst_7 {dimension_numbers = #tpu.dot_dimension_numbers<[1], [0], [0], [1], [0, 0, 1, 1], [], []>} : vector<8x128xf32>, vector<128x128xf32>, vector<8x128xf32> -> vector<8x128xf32>
    %c0_8 = arith.constant 0 : index
    %c0_9 = arith.constant 0 : index
    %9 = vector.load %arg5[%c0_8, %c0_9] : memref<1x128xf32, #tpu.memory_space<vmem>>, vector<1x128xf32>
    %10 = vector.broadcast %9 : vector<1x128xf32> to vector<8x128xf32>
    %11 = arith.addf %8, %10 : vector<8x128xf32>
    %12 = tpu.iota {dimensions = array<i32: 1>} : vector<8x128xi32>
    %c0_i32 = arith.constant 0 : i32
    %13 = vector.broadcast %c0_i32 : i32 to vector<8x128xi32>
    %14 = arith.addi %12, %13 : vector<8x128xi32>
    %c16_i32 = arith.constant 16 : i32
    %15 = vector.broadcast %c16_i32 : i32 to vector<8x128xi32>
    %16 = arith.cmpi sge, %14, %15 : vector<8x128xi32>
    %17 = math.exp %11 : vector<8x128xf32>
    %18 = arith.select %16, %17, %11 : vector<8x128xi1>, vector<8x128xf32>
    %c0_10 = arith.constant 0 : index
    %c0_11 = arith.constant 0 : index
    %19 = vector.load %arg6[%c0_10, %c0_11] : memref<8x128xf32, #tpu.memory_space<vmem>>, vector<8x128xf32>
    tpu.vector_store %arg6[%c0_10, %c0_11], %18 {strides = array<i32>} : memref<8x128xf32, #tpu.memory_space<vmem>>, vector<8x128xf32>,
    return
  }
  func.func @transform_0(%arg0: i32) -> (i32, i32) {
    %c0_i32 = arith.constant 0 : i32
    %c0_i32_0 = arith.constant 0 : i32
    return %arg0, %c0_i32 : i32, i32
  }
  func.func @transform_1(%arg0: i32) -> (i32, i32) {
    %c0_i32 = arith.constant 0 : i32
    %c0_i32_0 = arith.constant 0 : i32
    %c0_i32_1 = arith.constant 0 : i32
    return %c0_i32, %c0_i32_0 : i32, i32
  }
  func.func @transform_2(%arg0: i32) -> (i32, i32) {
    %c0_i32 = arith.constant 0 : i32
    %c0_i32_0 = arith.constant 0 : i32
    %c0_i32_1 = arith.constant 0 : i32
    return %c0_i32, %c0_i32_0 : i32, i32
  }
  func.func @transform_3(%arg0: i32) -> (i32, i32) {
    %c0_i32 = arith.constant 0 : i32
    %c0_i32_0 = arith.constant 0 : i32
    %c0_i32_1 = arith.constant 0 : i32
    return %c0_i32, %c0_i32_0 : i32, i32
  }
  func.func @transform_4(%arg0: i32) -> (i32, i32) {
    %c0_i32 = arith.constant 0 : i32
    %c0_i32_0 = arith.constant 0 : i32
    %c0_i32_1 = arith.constant 0 : i32
    return %c0_i32, %c0_i32_0 : i32, i32
  }
  func.func @transform_5(%arg0: i32) -> (i32, i32) {
    %c0_i32 = arith.constant 0 : i32
    %c0_i32_0 = arith.constant 0 : i32
    return %arg0, %c0_i32 : i32, i32
  }
}

module attributes {stable_mosaic.version = 11 : i64} {
  func.func @_mu_sigma_kernel(%arg0: i32, %arg1: memref<8x128xf32, #tpu.memory_space<vmem>>, %arg2: memref<128x128xf32, #tpu.memory_space<vmem>>, %arg3: memref<1x128xf32, #tpu.memory_space<vmem>>, %arg4: memref<128x128xf32, #tpu.memory_space<vmem>>, %arg5: memref<1x128xf32, #tpu.memory_space<vmem>>, %arg6: memref<8x128xf32, #tpu.memory_space<vmem>>) attributes {dimension_semantics = [#tpu.dimension_semantics<parallel>], iteration_bounds = array<i64: 1>, scalar_prefetch = 0 : i64, scratch_operands = 0 : i64, tpu.core_type = #tpu.core_type<tc>, window_params = [{transform_indices = @transform_0, window_bounds = array<i64: 8, 128>}, {pipeline_mode = #tpu.pipeline_mode<synchronous>, transform_indices = @transform_1, window_bounds = array<i64: 128, 128>}, {pipeline_mode = #tpu.pipeline_mode<synchronous>, transform_indices = @transform_2, window_bounds = array<i64: 1, 128>}, {pipeline_mode = #tpu.pipeline_mode<synchronous>, transform_indices = @transform_3, window_bounds = array<i64: 128, 128>}, {pipeline_mode = #tpu.pipeline_mode<synchronous>, transform_indices = @transform_4, window_bounds = array<i64: 1, 128>}, {transform_indices = @transform_5, window_bounds = array<i64: 8, 128>}]} {
    %c0 = arith.constant 0 : index
    %c0_0 = arith.constant 0 : index
    %0 = vector.load %arg1[%c0, %c0_0] : memref<8x128xf32, #tpu.memory_space<vmem>>, vector<8x128xf32>
    %c0_1 = arith.constant 0 : index
    %c0_2 = arith.constant 0 : index
    %1 = vector.load %arg2[%c0_1, %c0_2] : memref<128x128xf32, #tpu.memory_space<vmem>>, vector<128x128xf32>
    %cst = arith.constant dense<0.000000e+00> : vector<8x128xf32>
    %2 = tpu.matmul %0, %1, %cst {dimension_numbers = #tpu.dot_dimension_numbers<[1], [0], [0], [1], [0, 0, 1, 1], [], []>} : vector<8x128xf32>, vector<128x128xf32>, vector<8x128xf32> -> vector<8x128xf32>
    %c0_3 = arith.constant 0 : index
    %c0_4 = arith.constant 0 : index
    %3 = vector.load %arg3[%c0_3, %c0_4] : memref<1x128xf32, #tpu.memory_space<vmem>>, vector<1x128xf32>
    %4 = vector.broadcast %3 : vector<1x128xf32> to vector<8x128xf32>
    %5 = arith.addf %2, %4 : vector<8x128xf32>
    %6 = math.tanh %5 : vector<8x128xf32>
    %c0_5 = arith.constant 0 : index
    %c0_6 = arith.constant 0 : index
    %7 = vector.load %arg4[%c0_5, %c0_6] : memref<128x128xf32, #tpu.memory_space<vmem>>, vector<128x128xf32>
    %cst_7 = arith.constant dense<0.000000e+00> : vector<8x128xf32>
    %8 = tpu.matmul %6, %7, %cst_7 {dimension_numbers = #tpu.dot_dimension_numbers<[1], [0], [0], [1], [0, 0, 1, 1], [], []>} : vector<8x128xf32>, vector<128x128xf32>, vector<8x128xf32> -> vector<8x128xf32>
    %c0_8 = arith.constant 0 : index
    %c0_9 = arith.constant 0 : index
    %9 = vector.load %arg5[%c0_8, %c0_9] : memref<1x128xf32, #tpu.memory_space<vmem>>, vector<1x128xf32>
    %10 = vector.broadcast %9 : vector<1x128xf32> to vector<8x128xf32>
    %11 = arith.addf %8, %10 : vector<8x128xf32>
    %12 = tpu.iota {dimensions = array<i32: 1>} : vector<8x128xi32>
    %c0_i32 = arith.constant 0 : i32
    %13 = vector.broadcast %c0_i32 : i32 to vector<8x128xi32>
    %14 = arith.addi %12, %13 : vector<8x128xi32>
    %c16_i32 = arith.constant 16 : i32
    %15 = vector.broadcast %c16_i32 : i32 to vector<8x128xi32>
    %16 = arith.cmpi sge, %14, %15 : vector<8x128xi32>
    %17 = math.exp %11 : vector<8x128xf32>
    %18 = arith.select %16, %17, %11 : vector<8x128xi1>, vector<8x128xf32>
    %c0_10 = arith.constant 0 : index
    %c0_11 = arith.constant 0 : index
    %19 = vector.load %arg6[%c0_10, %c0_11] : memref<8x128xf32, #tpu.memory_space<vmem>>, vector<8x128xf32>
    tpu.vector_store %arg6[%c0_10, %c0_11], %18 {strides = array<i32>} : memref<8x128xf32, #tpu.memory_space<vmem>>, vector<8x128xf32>,
    return
  }
  func.func @transform_0(%arg0: i32) -> (i32, i32) {
    %c0_i32 = arith.constant 0 : i32
    %c0_i32_0 = arith.constant 0 : i32
    return %arg0, %c0_i32 : i32, i32
  }
  func.func @transform_1(%arg0: i32) -> (i32, i32) {
    %c0_i32 = arith.constant 0 : i32
    %c0_i32_0 = arith.constant 0 : i32
    %c0_i32_1 = arith.constant 0 : i32
    return %c0_i32, %c0_i32_0 : i32, i32
  }
  func.func @transform_2(%arg0: i32) -> (i32, i32) {
    %c0_i32 = arith.constant 0 : i32
    %c0_i32_0 = arith.constant 0 : i32
    %c0_i32_1 = arith.constant 0 : i32
    return %c0_i32, %c0_i32_0 : i32, i32
  }
  func.func @transform_3(%arg0: i32) -> (i32, i32) {
    %c0_i32 = arith.constant 0 : i32
    %c0_i32_0 = arith.constant 0 : i32
    %c0_i32_1 = arith.constant 0 : i32
    return %c0_i32, %c0_i32_0 : i32, i32
  }
  func.func @transform_4(%arg0: i32) -> (i32, i32) {
    %c0_i32 = arith.constant 0 : i32
    %c0_i32_0 = arith.constant 0 : i32
    %c0_i32_1 = arith.constant 0 : i32
    return %c0_i32, %c0_i32_0 : i32, i32
  }
  func.func @transform_5(%arg0: i32) -> (i32, i32) {
    %c0_i32 = arith.constant 0 : i32
    %c0_i32_0 = arith.constant 0 : i32
    return %arg0, %c0_i32 : i32, i32
  }
}

</mosaic_0001>

<llo_original>
// kernel: tpu_custom_call.1
$region0: #{tpu_custom_call.1}
  #allocation0 [shape = 'u32[]', space=smem, size = 0x4, offset = 0x4, fixed_abs, tag = 'smem constant byte address 0x4 - core index']
  #allocation1 [shape = 'u32[144,128]{1,0:T(1,128)}', space=vmem, size = 0x12000, scoped, tag = 'internal scratch']
  %s0 = inlined_call_operand.hbm [shape: f32[8,32], index: 0, kind: input, shape index: {}]
  %s1 = inlined_call_operand.hbm [shape: f32[32,128], index: 1, kind: input, shape index: {}]
  %s2 = inlined_call_operand.vmem [shape: f32[1,128], index: 2, kind: input, shape index: {}]
  %s3 = inlined_call_operand.hbm [shape: f32[128,128], index: 3, kind: input, shape index: {}]
  %s4 = inlined_call_operand.vmem [shape: f32[1,128], index: 4, kind: input, shape index: {}]
  %s5 = inlined_call_operand.hbm [shape: f32[8,128], index: 5, kind: output, shape index: {}]
  %s6 = sld [smem:[#allocation0]]
  $region42: #{tpu_custom_call.1} parent=0
    _
  %s8 = ssub.s32 1, %s6
  %s9 = scalar_select 0, %s8, %s6
  $region1: #{tpu_custom_call.1} parent=0
    #allocation2 [shape = 'u8[4096]{0}', space=vmem, size = 0x1000, scoped, tag = 'input window, operand 0, single buffered']
    #allocation3 [shape = 's32[1]{0}', space=sflag, size = 0x4, scoped, tag = 'scoped memory for tpu_custom_call.1']
    #allocation4 [shape = 's32[1]{0}', space=sflag, size = 0x4, scoped, tag = 'scoped memory for tpu_custom_call.1']
    #allocation5 [shape = 'u8[16384]{0}', space=vmem, size = 0x4000, scoped, tag = 'input window, operand 1, single buffered']
    #allocation6 [shape = 's32[1]{0}', space=sflag, size = 0x4, scoped, tag = 'scoped memory for tpu_custom_call.1']
    #allocation7 [shape = 'u8[65536]{0}', space=vmem, size = 0x10000, scoped, tag = 'input window, operand 3, single buffered']
    #allocation8 [shape = 'u8[4096]{0}', space=vmem, size = 0x1000, scoped, tag = 'output window, operand 0, single buffered']
    %10 = vsyncpa [#allocation3], 0
    %11 = vsyncpa [#allocation6], 0
    %12 = vsyncpa [#allocation4], 0
    // Predicated region
    $region2: #{tpu_custom_call.1} parent=1 // pred_check
      _
    $region3: #{tpu_custom_call.1} parent=1 // pred_check_branch
      %14 = sbr.rel (0) target = $region5
    $region4: #{tpu_custom_call.1} parent=1 // pred_region
      %s16 = ssub.s32 128, 128
      %17 = vsyncadd [#allocation3], %s16
      %s19 = sshll.u32 [#allocation2], 4
      %s20 = int_to_ptr.vmem [resolvable:$true] %s19
      %22 = dma.hbm_to_vmem [thread:$0]  %s0, 128, %s20, [#allocation3]
    $region5: #{tpu_custom_call.1} parent=1 // pred_fallthru
      _
    // Predicated region
    $region6: #{tpu_custom_call.1} parent=1 // pred_check
      _
    $region7: #{tpu_custom_call.1} parent=1 // pred_check_branch
      %24 = sbr.rel (0) target = $region9
    $region8: #{tpu_custom_call.1} parent=1 // pred_region
      %s26 = ssub.s32 512, 512
      %27 = vsyncadd [#allocation6], %s26
      %s28 = sshll.u32 [#allocation5], 4
      %s29 = int_to_ptr.vmem [resolvable:$true] %s28
      %34 = dma.hbm_to_vmem [thread:$0]  %s1, 512, %s29, [#allocation6], 128, 128, 8
    $region9: #{tpu_custom_call.1} parent=1 // pred_fallthru
      _
    // Predicated region
    $region10: #{tpu_custom_call.1} parent=1 // pred_check
      _
    $region11: #{tpu_custom_call.1} parent=1 // pred_check_branch
      %36 = sbr.rel (0) target = $region13
    $region12: #{tpu_custom_call.1} parent=1 // pred_region
      _
    $region13: #{tpu_custom_call.1} parent=1 // pred_fallthru
      _
    // Predicated region
    $region14: #{tpu_custom_call.1} parent=1 // pred_check
      _
    $region15: #{tpu_custom_call.1} parent=1 // pred_check_branch
      %38 = sbr.rel (0) target = $region17
    $region16: #{tpu_custom_call.1} parent=1 // pred_region
      %s40 = ssub.s32 2048, 2048
      %41 = vsyncadd [#allocation6], %s40
      %s42 = sshll.u32 [#allocation7], 4
      %s43 = int_to_ptr.vmem [resolvable:$true] %s42
      %48 = dma.hbm_to_vmem [thread:$0]  %s3, 2048, %s43, [#allocation6], 128, 128, 8
    $region17: #{tpu_custom_call.1} parent=1 // pred_fallthru
      _
    // Predicated region
    $region18: #{tpu_custom_call.1} parent=1 // pred_check
      _
    $region19: #{tpu_custom_call.1} parent=1 // pred_check_branch
      %50 = sbr.rel (0) target = $region21
    $region20: #{tpu_custom_call.1} parent=1 // pred_region
      _
    $region21: #{tpu_custom_call.1} parent=1 // pred_fallthru
      _
    // Predicated region
    $region22: #{tpu_custom_call.1} parent=1 // pred_check
      _
    $region23: #{tpu_custom_call.1} parent=1 // pred_check_branch
      %52 = sbr.rel (0) target = $region25
    $region24: #{tpu_custom_call.1} parent=1 // pred_region
      %53 = dma.done [#allocation3], 128
    $region25: #{tpu_custom_call.1} parent=1 // pred_fallthru
      _
    // Predicated region
    $region26: #{tpu_custom_call.1} parent=1 // pred_check
      _
    $region27: #{tpu_custom_call.1} parent=1 // pred_check_branch
      %55 = sbr.rel (0) target = $region29
    $region28: #{tpu_custom_call.1} parent=1 // pred_region
      %56 = dma.done [#allocation6], 512
    $region29: #{tpu_custom_call.1} parent=1 // pred_fallthru
      _
    // Predicated region
    $region30: #{tpu_custom_call.1} parent=1 // pred_check
      _
    $region31: #{tpu_custom_call.1} parent=1 // pred_check_branch
      %58 = sbr.rel (0) target = $region33
    $region32: #{tpu_custom_call.1} parent=1 // pred_region
      %59 = dma.done [#allocation6], 2048
    $region33: #{tpu_custom_call.1} parent=1 // pred_fallthru
      _
    %v60 = vld [vmem:[#allocation2] sm:$0xff]
    %v61 = vld [vmem:[#allocation5] sm:$0xff]
    %v62 = vld [vmem:[#allocation5 + $0x8] sm:$0xff]
    %v63 = vld [vmem:[#allocation5 + $0x10] sm:$0xff]
    %v64 = vld [vmem:[#allocation5 + $0x18] sm:$0xff]
    %v65 = vld [vmem:[%s2] sm:$0x1]
    %v67 = vlaneseq
    %v68 = vshrl.u32 %v67, 7
    %v69 = vsub.s32 0, %v68
    %v70 = vrot.slane %v65, %v69
    %vm72 = vcmask 261120
    %v74 = vsel %vm72, %v60, 0
    %76 = vmatprep.subr.mxu0 0.0
    %77 = vmatpush1.msra.mxu0 %v61
    %78 = vmatprep.subr.mxu0 0.0
    %79 = vmatpush1.msra.mxu0 %v62
    %80 = vmatprep.subr.mxu0 0.0
    %81 = vmatpush1.msra.mxu0 %v63
    %82 = vmatprep.subr.mxu0 0.0
    %83 = vmatpush1.msra.mxu0 %v64
    %84 = vmatprep.subr.mxu0 0.0
    %85 = vmatpush1.msra.mxu0 0.0
    %86 = vmatprep.subr.mxu0 0.0
    %87 = vmatpush1.msra.mxu0 0.0
    %88 = vmatprep.subr.mxu0 0.0
    %89 = vmatpush1.msra.mxu0 0.0
    %90 = vmatprep.subr.mxu0 0.0
    %91 = vmatpush1.msra.mxu0 0.0
    %92 = vmatprep.subr.mxu0 0.0
    %93 = vmatpush1.msra.mxu0 0.0
    %94 = vmatprep.subr.mxu0 0.0
    %95 = vmatpush1.msra.mxu0 0.0
    %96 = vmatprep.subr.mxu0 0.0
    %97 = vmatpush1.msra.mxu0 0.0
    %98 = vmatprep.subr.mxu0 0.0
    %99 = vmatpush1.msra.mxu0 0.0
    %100 = vmatprep.subr.mxu0 0.0
    %101 = vmatpush1.msra.mxu0 0.0
    %102 = vmatprep.subr.mxu0 0.0
    %103 = vmatpush1.msra.mxu0 0.0
    %104 = vmatprep.subr.mxu0 0.0
    %105 = vmatpush1.msra.mxu0 0.0
    %106 = vmatprep.subr.mxu0 0.0
    %107 = vmatpush1.msra.mxu0 0.0
    %108 = vmatprep.subr.mxu0 0.0
    %109 = vmatpush1.msra.mxu0 0.0
    %110 = vmatprep.subr.mxu0 0.0
    %111 = vmatpush1.msra.mxu0 0.0
    %112 = vmatprep.subr.mxu0 0.0
    %113 = vmatpush1.msra.mxu0 0.0
    %114 = vmatprep.subr.mxu0 0.0
    %115 = vmatpush1.msra.mxu0 0.0
    %116 = vmatprep.subr.mxu0 0.0
    %117 = vmatpush1.msra.mxu0 0.0
    %118 = vmatprep.subr.mxu0 0.0
    %119 = vmatpush1.msra.mxu0 0.0
    %120 = vmatprep.subr.mxu0 0.0
    %121 = vmatpush1.msra.mxu0 0.0
    %122 = vmatprep.subr.mxu0 0.0
    %123 = vmatpush1.msra.mxu0 0.0
    %124 = vmatprep.subr.mxu0 0.0
    %125 = vmatpush1.msra.mxu0 0.0
    %126 = vmatprep.subr.mxu0 0.0
    %127 = vmatpush1.msra.mxu0 0.0
    %128 = vmatprep.subr.mxu0 0.0
    %129 = vmatpush1.msra.mxu0 0.0
    %130 = vmatprep.subr.mxu0 0.0
    %131 = vmatpush1.msra.mxu0 0.0
    %132 = vmatprep.subr.mxu0 0.0
    %133 = vmatpush1.msra.mxu0 0.0
    %134 = vmatprep.subr.mxu0 0.0
    %135 = vmatpush1.msra.mxu0 0.0
    %136 = vmatprep.subr.mxu0 0.0
    %137 = vmatpush1.msra.mxu0 0.0
    %138 = vmatprep.subr.mxu0 0.0
    %139 = vmatpush1.msra.mxu0 0.0
    %140 = vmatprep.mubr.f32.mxu0 0.0
    %141 = vmatmul.mubr.f32.gmra.mrb[0].mxu0 %v74
    %v142 = vpop.f32.mrb[0].mxu0
    %v143 = vadd.f32 %v70, %v142
    %v144 = vpop.f32.mrb[0].mxu0
    %145 = vdwg.mxu0
    %v146 = vtanh.pop %v143
    %v147 = vld [vmem:[#allocation7] sm:$0xff]
    %v148 = vld [vmem:[#allocation7 + $0x8] sm:$0xff]
    %v149 = vld [vmem:[#allocation7 + $0x10] sm:$0xff]
    %v150 = vld [vmem:[#allocation7 + $0x18] sm:$0xff]
    %v151 = vld [vmem:[#allocation7 + $0x20] sm:$0xff]
    %v152 = vld [vmem:[#allocation7 + $0x28] sm:$0xff]
    %v153 = vld [vmem:[#allocation7 + $0x30] sm:$0xff]
    %v154 = vld [vmem:[#allocation7 + $0x38] sm:$0xff]
    %v155 = vld [vmem:[#allocation7 + $0x40] sm:$0xff]
    %v156 = vld [vmem:[#allocation7 + $0x48] sm:$0xff]
    %v157 = vld [vmem:[#allocation7 + $0x50] sm:$0xff]
    %v158 = vld [vmem:[#allocation7 + $0x58] sm:$0xff]
    %v159 = vld [vmem:[#allocation7 + $0x60] sm:$0xff]
    %v160 = vld [vmem:[#allocation7 + $0x68] sm:$0xff]
    %v161 = vld [vmem:[#allocation7 + $0x70] sm:$0xff]
    %v162 = vld [vmem:[#allocation7 + $0x78] sm:$0xff]
    %v163 = vld [vmem:[%s4] sm:$0x1]
    %v165 = vlaneseq
    %v166 = vshrl.u32 %v165, 7
    %v167 = vsub.s32 0, %v166
    %v168 = vrot.slane %v163, %v167
    %170 = vmatprep.subr.mxu0 0.0
    %171 = vmatpush1.msra.mxu0 %v147
    %172 = vmatprep.subr.mxu0 0.0
    %173 = vmatpush1.msra.mxu0 %v148
    %174 = vmatprep.subr.mxu0 0.0
    %175 = vmatpush1.msra.mxu0 %v149
    %176 = vmatprep.subr.mxu0 0.0
    %177 = vmatpush1.msra.mxu0 %v150
    %178 = vmatprep.subr.mxu0 0.0
    %179 = vmatpush1.msra.mxu0 %v151
    %180 = vmatprep.subr.mxu0 0.0
    %181 = vmatpush1.msra.mxu0 %v152
    %182 = vmatprep.subr.mxu0 0.0
    %183 = vmatpush1.msra.mxu0 %v153
    %184 = vmatprep.subr.mxu0 0.0
    %185 = vmatpush1.msra.mxu0 %v154
    %186 = vmatprep.subr.mxu0 0.0
    %187 = vmatpush1.msra.mxu0 %v155
    %188 = vmatprep.subr.mxu0 0.0
    %189 = vmatpush1.msra.mxu0 %v156
    %190 = vmatprep.subr.mxu0 0.0
    %191 = vmatpush1.msra.mxu0 %v157
    %192 = vmatprep.subr.mxu0 0.0
    %193 = vmatpush1.msra.mxu0 %v158
    %194 = vmatprep.subr.mxu0 0.0
    %195 = vmatpush1.msra.mxu0 %v159
    %196 = vmatprep.subr.mxu0 0.0
    %197 = vmatpush1.msra.mxu0 %v160
    %198 = vmatprep.subr.mxu0 0.0
    %199 = vmatpush1.msra.mxu0 %v161
    %200 = vmatprep.subr.mxu0 0.0
    %201 = vmatpush1.msra.mxu0 %v162
    %202 = vmatprep.subr.mxu0 0.0
    %203 = vmatpush1.msra.mxu0 0.0
    %204 = vmatprep.subr.mxu0 0.0
    %205 = vmatpush1.msra.mxu0 0.0
    %206 = vmatprep.subr.mxu0 0.0
    %207 = vmatpush1.msra.mxu0 0.0
    %208 = vmatprep.subr.mxu0 0.0
    %209 = vmatpush1.msra.mxu0 0.0
    %210 = vmatprep.subr.mxu0 0.0
    %211 = vmatpush1.msra.mxu0 0.0
    %212 = vmatprep.subr.mxu0 0.0
    %213 = vmatpush1.msra.mxu0 0.0
    %214 = vmatprep.subr.mxu0 0.0
    %215 = vmatpush1.msra.mxu0 0.0
    %216 = vmatprep.subr.mxu0 0.0
    %217 = vmatpush1.msra.mxu0 0.0
    %218 = vmatprep.subr.mxu0 0.0
    %219 = vmatpush1.msra.mxu0 0.0
    %220 = vmatprep.subr.mxu0 0.0
    %221 = vmatpush1.msra.mxu0 0.0
    %222 = vmatprep.subr.mxu0 0.0
    %223 = vmatpush1.msra.mxu0 0.0
    %224 = vmatprep.subr.mxu0 0.0
    %225 = vmatpush1.msra.mxu0 0.0
    %226 = vmatprep.subr.mxu0 0.0
    %227 = vmatpush1.msra.mxu0 0.0
    %228 = vmatprep.subr.mxu0 0.0
    %229 = vmatpush1.msra.mxu0 0.0
    %230 = vmatprep.subr.mxu0 0.0
    %231 = vmatpush1.msra.mxu0 0.0
    %232 = vmatprep.subr.mxu0 0.0
    %233 = vmatpush1.msra.mxu0 0.0
    %234 = vmatprep.mubr.f32.mxu0 0.0
    %235 = vmatmul.mubr.f32.gmra.mrb[0].mxu0 %v146
    %v236 = vpop.f32.mrb[0].mxu0
    %v237 = vadd.f32 %v168, %v236
    %v238 = vpop.f32.mrb[0].mxu0
    %239 = vdwg.mxu0
    %v240 = vlaneseq
    %v241 = vand.u32 %v240, 127
    %vm242 = vcmp.ge.s32.totalorder %v241, 16
    %v243 = vmul.f32 %v237, 1.442695
    %v244 = vpow.pop %v243
    %v245 = vsel %vm242, %v244, %v237
    %246 = vst [vmem:[#allocation8] sm:$0xff] %v245
    // Predicated region
    $region34: #{tpu_custom_call.1} parent=1 // pred_check
      _
    $region35: #{tpu_custom_call.1} parent=1 // pred_check_branch
      %248 = sbr.rel (0) target = $region37
    $region36: #{tpu_custom_call.1} parent=1 // pred_region
      %s250 = ssub.s32 128, 128
      %251 = vsyncadd [#allocation4], %s250
      %s253 = sshll.u32 [#allocation8], 4
      %s254 = int_to_ptr.vmem [resolvable:$true] %s253
      %256 = dma.vmem_to_hbm [thread:$0]  %s254, 128, %s5, [#allocation4]
    $region37: #{tpu_custom_call.1} parent=1 // pred_fallthru
      _
    // Predicated region
    $region38: #{tpu_custom_call.1} parent=1 // pred_check
      _
    $region39: #{tpu_custom_call.1} parent=1 // pred_check_branch
      %258 = sbr.rel (0) target = $region41
    $region40: #{tpu_custom_call.1} parent=1 // pred_region
      %259 = dma.done [#allocation4], 128
    $region41: #{tpu_custom_call.1} parent=1 // pred_fallthru
      _
    %260 = vsyncpa [#allocation3], 1
    %261 = vsyncpa [#allocation6], 1
    %262 = vsyncpa [#allocation4], 1

// kernel: tpu_custom_call.1
$region0: #{tpu_custom_call.1}
  #allocation0 [shape = 'u32[]', space=smem, size = 0x4, offset = 0x4, fixed_abs, tag = 'smem constant byte address 0x4 - core index']
  #allocation1 [shape = 'u32[144,128]{1,0:T(1,128)}', space=vmem, size = 0x12000, scoped, tag = 'internal scratch']
  %s0 = inlined_call_operand.hbm [shape: f32[8,32], index: 0, kind: input, shape index: {}]
  %s1 = inlined_call_operand.hbm [shape: f32[32,128], index: 1, kind: input, shape index: {}]
  %s2 = inlined_call_operand.vmem [shape: f32[1,128], index: 2, kind: input, shape index: {}]
  %s3 = inlined_call_operand.hbm [shape: f32[128,128], index: 3, kind: input, shape index: {}]
  %s4 = inlined_call_operand.vmem [shape: f32[1,128], index: 4, kind: input, shape index: {}]
  %s5 = inlined_call_operand.hbm [shape: f32[8,128], index: 5, kind: output, shape index: {}]
  %s6 = sld [smem:[#allocation0]]
  $region42: #{tpu_custom_call.1} parent=0
    _
  %s8 = ssub.s32 1, %s6
  %s9 = scalar_select 0, %s8, %s6
  $region1: #{tpu_custom_call.1} parent=0
    #allocation2 [shape = 'u8[4096]{0}', space=vmem, size = 0x1000, scoped, tag = 'input window, operand 0, single buffered']
    #allocation3 [shape = 's32[1]{0}', space=sflag, size = 0x4, scoped, tag = 'scoped memory for tpu_custom_call.1']
    #allocation4 [shape = 's32[1]{0}', space=sflag, size = 0x4, scoped, tag = 'scoped memory for tpu_custom_call.1']
    #allocation5 [shape = 'u8[16384]{0}', space=vmem, size = 0x4000, scoped, tag = 'input window, operand 1, single buffered']
    #allocation6 [shape = 's32[1]{0}', space=sflag, size = 0x4, scoped, tag = 'scoped memory for tpu_custom_call.1']
    #allocation7 [shape = 'u8[65536]{0}', space=vmem, size = 0x10000, scoped, tag = 'input window, operand 3, single buffered']
    #allocation8 [shape = 'u8[4096]{0}', space=vmem, size = 0x1000, scoped, tag = 'output window, operand 0, single buffered']
    %10 = vsyncpa [#allocation3], 0
    %11 = vsyncpa [#allocation6], 0
    %12 = vsyncpa [#allocation4], 0
    // Predicated region
    $region2: #{tpu_custom_call.1} parent=1 // pred_check
      _
    $region3: #{tpu_custom_call.1} parent=1 // pred_check_branch
      %14 = sbr.rel (0) target = $region5
    $region4: #{tpu_custom_call.1} parent=1 // pred_region
      %s16 = ssub.s32 128, 128
      %17 = vsyncadd [#allocation3], %s16
      %s19 = sshll.u32 [#allocation2], 4
      %s20 = int_to_ptr.vmem [resolvable:$true] %s19
      %22 = dma.hbm_to_vmem [thread:$0]  %s0, 128, %s20, [#allocation3]
    $region5: #{tpu_custom_call.1} parent=1 // pred_fallthru
      _
    // Predicated region
    $region6: #{tpu_custom_call.1} parent=1 // pred_check
      _
    $region7: #{tpu_custom_call.1} parent=1 // pred_check_branch
      %24 = sbr.rel (0) target = $region9
    $region8: #{tpu_custom_call.1} parent=1 // pred_region
      %s26 = ssub.s32 512, 512
      %27 = vsyncadd [#allocation6], %s26
      %s28 = sshll.u32 [#allocation5], 4
      %s29 = int_to_ptr.vmem [resolvable:$true] %s28
      %34 = dma.hbm_to_vmem [thread:$0]  %s1, 512, %s29, [#allocation6], 128, 128, 8
    $region9: #{tpu_custom_call.1} parent=1 // pred_fallthru
      _
    // Predicated region
    $region10: #{tpu_custom_call.1} parent=1 // pred_check
      _
    $region11: #{tpu_custom_call.1} parent=1 // pred_check_branch
      %36 = sbr.rel (0) target = $region13
    $region12: #{tpu_custom_call.1} parent=1 // pred_region
      _
    $region13: #{tpu_custom_call.1} parent=1 // pred_fallthru
      _
    // Predicated region
    $region14: #{tpu_custom_call.1} parent=1 // pred_check
      _
    $region15: #{tpu_custom_call.1} parent=1 // pred_check_branch
      %38 = sbr.rel (0) target = $region17
    $region16: #{tpu_custom_call.1} parent=1 // pred_region
      %s40 = ssub.s32 2048, 2048
      %41 = vsyncadd [#allocation6], %s40
      %s42 = sshll.u32 [#allocation7], 4
      %s43 = int_to_ptr.vmem [resolvable:$true] %s42
      %48 = dma.hbm_to_vmem [thread:$0]  %s3, 2048, %s43, [#allocation6], 128, 128, 8
    $region17: #{tpu_custom_call.1} parent=1 // pred_fallthru
      _
    // Predicated region
    $region18: #{tpu_custom_call.1} parent=1 // pred_check
      _
    $region19: #{tpu_custom_call.1} parent=1 // pred_check_branch
      %50 = sbr.rel (0) target = $region21
    $region20: #{tpu_custom_call.1} parent=1 // pred_region
      _
    $region21: #{tpu_custom_call.1} parent=1 // pred_fallthru
      _
    // Predicated region
    $region22: #{tpu_custom_call.1} parent=1 // pred_check
      _
    $region23: #{tpu_custom_call.1} parent=1 // pred_check_branch
      %52 = sbr.rel (0) target = $region25
    $region24: #{tpu_custom_call.1} parent=1 // pred_region
      %53 = dma.done [#allocation3], 128
    $region25: #{tpu_custom_call.1} parent=1 // pred_fallthru
      _
    // Predicated region
    $region26: #{tpu_custom_call.1} parent=1 // pred_check
      _
    $region27: #{tpu_custom_call.1} parent=1 // pred_check_branch
      %55 = sbr.rel (0) target = $region29
    $region28: #{tpu_custom_call.1} parent=1 // pred_region
      %56 = dma.done [#allocation6], 512
    $region29: #{tpu_custom_call.1} parent=1 // pred_fallthru
      _
    // Predicated region
    $region30: #{tpu_custom_call.1} parent=1 // pred_check
      _
    $region31: #{tpu_custom_call.1} parent=1 // pred_check_branch
      %58 = sbr.rel (0) target = $region33
    $region32: #{tpu_custom_call.1} parent=1 // pred_region
      %59 = dma.done [#allocation6], 2048
    $region33: #{tpu_custom_call.1} parent=1 // pred_fallthru
      _
    %v60 = vld [vmem:[#allocation2] sm:$0xff]
    %v61 = vld [vmem:[#allocation5] sm:$0xff]
    %v62 = vld [vmem:[#allocation5 + $0x8] sm:$0xff]
    %v63 = vld [vmem:[#allocation5 + $0x10] sm:$0xff]
    %v64 = vld [vmem:[#allocation5 + $0x18] sm:$0xff]
    %v65 = vld [vmem:[%s2] sm:$0x1]
    %v67 = vlaneseq
    %v68 = vshrl.u32 %v67, 7
    %v69 = vsub.s32 0, %v68
    %v70 = vrot.slane %v65, %v69
    %vm72 = vcmask 261120
    %v74 = vsel %vm72, %v60, 0
    %76 = vmatprep.subr.mxu0 0.0
    %77 = vmatpush1.msra.mxu0 %v61
    %78 = vmatprep.subr.mxu0 0.0
    %79 = vmatpush1.msra.mxu0 %v62
    %80 = vmatprep.subr.mxu0 0.0
    %81 = vmatpush1.msra.mxu0 %v63
    %82 = vmatprep.subr.mxu0 0.0
    %83 = vmatpush1.msra.mxu0 %v64
    %84 = vmatprep.subr.mxu0 0.0
    %85 = vmatpush1.msra.mxu0 0.0
    %86 = vmatprep.subr.mxu0 0.0
    %87 = vmatpush1.msra.mxu0 0.0
    %88 = vmatprep.subr.mxu0 0.0
    %89 = vmatpush1.msra.mxu0 0.0
    %90 = vmatprep.subr.mxu0 0.0
    %91 = vmatpush1.msra.mxu0 0.0
    %92 = vmatprep.subr.mxu0 0.0
    %93 = vmatpush1.msra.mxu0 0.0
    %94 = vmatprep.subr.mxu0 0.0
    %95 = vmatpush1.msra.mxu0 0.0
    %96 = vmatprep.subr.mxu0 0.0
    %97 = vmatpush1.msra.mxu0 0.0
    %98 = vmatprep.subr.mxu0 0.0
    %99 = vmatpush1.msra.mxu0 0.0
    %100 = vmatprep.subr.mxu0 0.0
    %101 = vmatpush1.msra.mxu0 0.0
    %102 = vmatprep.subr.mxu0 0.0
    %103 = vmatpush1.msra.mxu0 0.0
    %104 = vmatprep.subr.mxu0 0.0
    %105 = vmatpush1.msra.mxu0 0.0
    %106 = vmatprep.subr.mxu0 0.0
    %107 = vmatpush1.msra.mxu0 0.0
    %108 = vmatprep.subr.mxu0 0.0
    %109 = vmatpush1.msra.mxu0 0.0
    %110 = vmatprep.subr.mxu0 0.0
    %111 = vmatpush1.msra.mxu0 0.0
    %112 = vmatprep.subr.mxu0 0.0
    %113 = vmatpush1.msra.mxu0 0.0
    %114 = vmatprep.subr.mxu0 0.0
    %115 = vmatpush1.msra.mxu0 0.0
    %116 = vmatprep.subr.mxu0 0.0
    %117 = vmatpush1.msra.mxu0 0.0
    %118 = vmatprep.subr.mxu0 0.0
    %119 = vmatpush1.msra.mxu0 0.0
    %120 = vmatprep.subr.mxu0 0.0
    %121 = vmatpush1.msra.mxu0 0.0
    %122 = vmatprep.subr.mxu0 0.0
    %123 = vmatpush1.msra.mxu0 0.0
    %124 = vmatprep.subr.mxu0 0.0
    %125 = vmatpush1.msra.mxu0 0.0
    %126 = vmatprep.subr.mxu0 0.0
    %127 = vmatpush1.msra.mxu0 0.0
    %128 = vmatprep.subr.mxu0 0.0
    %129 = vmatpush1.msra.mxu0 0.0
    %130 = vmatprep.subr.mxu0 0.0
    %131 = vmatpush1.msra.mxu0 0.0
    %132 = vmatprep.subr.mxu0 0.0
    %133 = vmatpush1.msra.mxu0 0.0
    %134 = vmatprep.subr.mxu0 0.0
    %135 = vmatpush1.msra.mxu0 0.0
    %136 = vmatprep.subr.mxu0 0.0
    %137 = vmatpush1.msra.mxu0 0.0
    %138 = vmatprep.subr.mxu0 0.0
    %139 = vmatpush1.msra.mxu0 0.0
    %140 = vmatprep.mubr.f32.mxu0 0.0
    %141 = vmatmul.mubr.f32.gmra.mrb[0].mxu0 %v74
    %v142 = vpop.f32.mrb[0].mxu0
    %v143 = vadd.f32 %v70, %v142
    %v144 = vpop.f32.mrb[0].mxu0
    %145 = vdwg.mxu0
    %v146 = vtanh.pop %v143
    %v147 = vld [vmem:[#allocation7] sm:$0xff]
    %v148 = vld [vmem:[#allocation7 + $0x8] sm:$0xff]
    %v149 = vld [vmem:[#allocation7 + $0x10] sm:$0xff]
    %v150 = vld [vmem:[#allocation7 + $0x18] sm:$0xff]
    %v151 = vld [vmem:[#allocation7 + $0x20] sm:$0xff]
    %v152 = vld [vmem:[#allocation7 + $0x28] sm:$0xff]
    %v153 = vld [vmem:[#allocation7 + $0x30] sm:$0xff]
    %v154 = vld [vmem:[#allocation7 + $0x38] sm:$0xff]
    %v155 = vld [vmem:[#allocation7 + $0x40] sm:$0xff]
    %v156 = vld [vmem:[#allocation7 + $0x48] sm:$0xff]
    %v157 = vld [vmem:[#allocation7 + $0x50] sm:$0xff]
    %v158 = vld [vmem:[#allocation7 + $0x58] sm:$0xff]
    %v159 = vld [vmem:[#allocation7 + $0x60] sm:$0xff]
    %v160 = vld [vmem:[#allocation7 + $0x68] sm:$0xff]
    %v161 = vld [vmem:[#allocation7 + $0x70] sm:$0xff]
    %v162 = vld [vmem:[#allocation7 + $0x78] sm:$0xff]
    %v163 = vld [vmem:[%s4] sm:$0x1]
    %v165 = vlaneseq
    %v166 = vshrl.u32 %v165, 7
    %v167 = vsub.s32 0, %v166
    %v168 = vrot.slane %v163, %v167
    %170 = vmatprep.subr.mxu0 0.0
    %171 = vmatpush1.msra.mxu0 %v147
    %172 = vmatprep.subr.mxu0 0.0
    %173 = vmatpush1.msra.mxu0 %v148
    %174 = vmatprep.subr.mxu0 0.0
    %175 = vmatpush1.msra.mxu0 %v149
    %176 = vmatprep.subr.mxu0 0.0
    %177 = vmatpush1.msra.mxu0 %v150
    %178 = vmatprep.subr.mxu0 0.0
    %179 = vmatpush1.msra.mxu0 %v151
    %180 = vmatprep.subr.mxu0 0.0
    %181 = vmatpush1.msra.mxu0 %v152
    %182 = vmatprep.subr.mxu0 0.0
    %183 = vmatpush1.msra.mxu0 %v153
    %184 = vmatprep.subr.mxu0 0.0
    %185 = vmatpush1.msra.mxu0 %v154
    %186 = vmatprep.subr.mxu0 0.0
    %187 = vmatpush1.msra.mxu0 %v155
    %188 = vmatprep.subr.mxu0 0.0
    %189 = vmatpush1.msra.mxu0 %v156
    %190 = vmatprep.subr.mxu0 0.0
    %191 = vmatpush1.msra.mxu0 %v157
    %192 = vmatprep.subr.mxu0 0.0
    %193 = vmatpush1.msra.mxu0 %v158
    %194 = vmatprep.subr.mxu0 0.0
    %195 = vmatpush1.msra.mxu0 %v159
    %196 = vmatprep.subr.mxu0 0.0
    %197 = vmatpush1.msra.mxu0 %v160
    %198 = vmatprep.subr.mxu0 0.0
    %199 = vmatpush1.msra.mxu0 %v161
    %200 = vmatprep.subr.mxu0 0.0
    %201 = vmatpush1.msra.mxu0 %v162
    %202 = vmatprep.subr.mxu0 0.0
    %203 = vmatpush1.msra.mxu0 0.0
    %204 = vmatprep.subr.mxu0 0.0
    %205 = vmatpush1.msra.mxu0 0.0
    %206 = vmatprep.subr.mxu0 0.0
    %207 = vmatpush1.msra.mxu0 0.0
    %208 = vmatprep.subr.mxu0 0.0
    %209 = vmatpush1.msra.mxu0 0.0
    %210 = vmatprep.subr.mxu0 0.0
    %211 = vmatpush1.msra.mxu0 0.0
    %212 = vmatprep.subr.mxu0 0.0
    %213 = vmatpush1.msra.mxu0 0.0
    %214 = vmatprep.subr.mxu0 0.0
    %215 = vmatpush1.msra.mxu0 0.0
    %216 = vmatprep.subr.mxu0 0.0
    %217 = vmatpush1.msra.mxu0 0.0
    %218 = vmatprep.subr.mxu0 0.0
    %219 = vmatpush1.msra.mxu0 0.0
    %220 = vmatprep.subr.mxu0 0.0
    %221 = vmatpush1.msra.mxu0 0.0
    %222 = vmatprep.subr.mxu0 0.0
    %223 = vmatpush1.msra.mxu0 0.0
    %224 = vmatprep.subr.mxu0 0.0
    %225 = vmatpush1.msra.mxu0 0.0
    %226 = vmatprep.subr.mxu0 0.0
    %227 = vmatpush1.msra.mxu0 0.0
    %228 = vmatprep.subr.mxu0 0.0
    %229 = vmatpush1.msra.mxu0 0.0
    %230 = vmatprep.subr.mxu0 0.0
    %231 = vmatpush1.msra.mxu0 0.0
    %232 = vmatprep.subr.mxu0 0.0
    %233 = vmatpush1.msra.mxu0 0.0
    %234 = vmatprep.mubr.f32.mxu0 0.0
    %235 = vmatmul.mubr.f32.gmra.mrb[0].mxu0 %v146
    %v236 = vpop.f32.mrb[0].mxu0
    %v237 = vadd.f32 %v168, %v236
    %v238 = vpop.f32.mrb[0].mxu0
    %239 = vdwg.mxu0
    %v240 = vlaneseq
    %v241 = vand.u32 %v240, 127
    %vm242 = vcmp.ge.s32.totalorder %v241, 16
    %v243 = vmul.f32 %v237, 1.442695
    %v244 = vpow.pop %v243
    %v245 = vsel %vm242, %v244, %v237
    %246 = vst [vmem:[#allocation8] sm:$0xff] %v245
    // Predicated region
    $region34: #{tpu_custom_call.1} parent=1 // pred_check
      _
    $region35: #{tpu_custom_call.1} parent=1 // pred_check_branch
      %248 = sbr.rel (0) target = $region37
    $region36: #{tpu_custom_call.1} parent=1 // pred_region
      %s250 = ssub.s32 128, 128
      %251 = vsyncadd [#allocation4], %s250
      %s253 = sshll.u32 [#allocation8], 4
      %s254 = int_to_ptr.vmem [resolvable:$true] %s253
      %256 = dma.vmem_to_hbm [thread:$0]  %s254, 128, %s5, [#allocation4]
    $region37: #{tpu_custom_call.1} parent=1 // pred_fallthru
      _
    // Predicated region
    $region38: #{tpu_custom_call.1} parent=1 // pred_check
      _
    $region39: #{tpu_custom_call.1} parent=1 // pred_check_branch
      %258 = sbr.rel (0) target = $region41
    $region40: #{tpu_custom_call.1} parent=1 // pred_region
      %259 = dma.done [#allocation4], 128
    $region41: #{tpu_custom_call.1} parent=1 // pred_fallthru
      _
    %260 = vsyncpa [#allocation3], 1
    %261 = vsyncpa [#allocation6], 1
    %262 = vsyncpa [#allocation4], 1

// kernel: tpu_custom_call.1
$region0: #{tpu_custom_call.1}
  #allocation0 [shape = 'u32[]', space=smem, size = 0x4, offset = 0x4, fixed_abs, tag = 'smem constant byte address 0x4 - core index']
  #allocation1 [shape = 'u32[144,128]{1,0:T(1,128)}', space=vmem, size = 0x12000, scoped, tag = 'internal scratch']
  %s0 = inlined_call_operand.hbm [shape: f32[8,128], index: 0, kind: input, shape index: {}]
  %s1 = inlined_call_operand.hbm [shape: f32[128,128], index: 1, kind: input, shape index: {}]
  %s2 = inlined_call_operand.vmem [shape: f32[1,128], index: 2, kind: input, shape index: {}]
  %s3 = inlined_call_operand.hbm [shape: f32[128,128], index: 3, kind: input, shape index: {}]
  %s4 = inlined_call_operand.vmem [shape: f32[1,128], index: 4, kind: input, shape index: {}]
  %s5 = inlined_call_operand.hbm [shape: f32[8,128], index: 5, kind: output, shape index: {}]
  %s6 = sld [smem:[#allocation0]]
  $region42: #{tpu_custom_call.1} parent=0
    _
  %s8 = ssub.s32 1, %s6
  %s9 = scalar_select 0, %s8, %s6
  $region1: #{tpu_custom_call.1} parent=0
    #allocation2 [shape = 'u8[4096]{0}', space=vmem, size = 0x1000, scoped, tag = 'input window, operand 0, single buffered']
    #allocation3 [shape = 's32[1]{0}', space=sflag, size = 0x4, scoped, tag = 'scoped memory for tpu_custom_call.1']
    #allocation4 [shape = 's32[1]{0}', space=sflag, size = 0x4, scoped, tag = 'scoped memory for tpu_custom_call.1']
    #allocation5 [shape = 'u8[65536]{0}', space=vmem, size = 0x10000, scoped, tag = 'input window, operand 1, single buffered']
    #allocation6 [shape = 's32[1]{0}', space=sflag, size = 0x4, scoped, tag = 'scoped memory for tpu_custom_call.1']
    #allocation7 [shape = 'u8[65536]{0}', space=vmem, size = 0x10000, scoped, tag = 'input window, operand 3, single buffered']
    #allocation8 [shape = 'u8[4096]{0}', space=vmem, size = 0x1000, scoped, tag = 'output window, operand 0, single buffered']
    %10 = vsyncpa [#allocation3], 0
    %11 = vsyncpa [#allocation6], 0
    %12 = vsyncpa [#allocation4], 0
    // Predicated region
    $region2: #{tpu_custom_call.1} parent=1 // pred_check
      _
    $region3: #{tpu_custom_call.1} parent=1 // pred_check_branch
      %14 = sbr.rel (0) target = $region5
    $region4: #{tpu_custom_call.1} parent=1 // pred_region
      %s16 = ssub.s32 128, 128
      %17 = vsyncadd [#allocation3], %s16
      %s19 = sshll.u32 [#allocation2], 4
      %s20 = int_to_ptr.vmem [resolvable:$true] %s19
      %22 = dma.hbm_to_vmem [thread:$0]  %s0, 128, %s20, [#allocation3]
    $region5: #{tpu_custom_call.1} parent=1 // pred_fallthru
      _
    // Predicated region
    $region6: #{tpu_custom_call.1} parent=1 // pred_check
      _
    $region7: #{tpu_custom_call.1} parent=1 // pred_check_branch
      %24 = sbr.rel (0) target = $region9
    $region8: #{tpu_custom_call.1} parent=1 // pred_region
      %s26 = ssub.s32 2048, 2048
      %27 = vsyncadd [#allocation6], %s26
      %s28 = sshll.u32 [#allocation5], 4
      %s29 = int_to_ptr.vmem [resolvable:$true] %s28
      %34 = dma.hbm_to_vmem [thread:$0]  %s1, 2048, %s29, [#allocation6], 128, 128, 8
    $region9: #{tpu_custom_call.1} parent=1 // pred_fallthru
      _
    // Predicated region
    $region10: #{tpu_custom_call.1} parent=1 // pred_check
      _
    $region11: #{tpu_custom_call.1} parent=1 // pred_check_branch
      %36 = sbr.rel (0) target = $region13
    $region12: #{tpu_custom_call.1} parent=1 // pred_region
      _
    $region13: #{tpu_custom_call.1} parent=1 // pred_fallthru
      _
    // Predicated region
    $region14: #{tpu_custom_call.1} parent=1 // pred_check
      _
    $region15: #{tpu_custom_call.1} parent=1 // pred_check_branch
      %38 = sbr.rel (0) target = $region17
    $region16: #{tpu_custom_call.1} parent=1 // pred_region
      %s40 = ssub.s32 2048, 2048
      %41 = vsyncadd [#allocation6], %s40
      %s42 = sshll.u32 [#allocation7], 4
      %s43 = int_to_ptr.vmem [resolvable:$true] %s42
      %48 = dma.hbm_to_vmem [thread:$0]  %s3, 2048, %s43, [#allocation6], 128, 128, 8
    $region17: #{tpu_custom_call.1} parent=1 // pred_fallthru
      _
    // Predicated region
    $region18: #{tpu_custom_call.1} parent=1 // pred_check
      _
    $region19: #{tpu_custom_call.1} parent=1 // pred_check_branch
      %50 = sbr.rel (0) target = $region21
    $region20: #{tpu_custom_call.1} parent=1 // pred_region
      _
    $region21: #{tpu_custom_call.1} parent=1 // pred_fallthru
      _
    // Predicated region
    $region22: #{tpu_custom_call.1} parent=1 // pred_check
      _
    $region23: #{tpu_custom_call.1} parent=1 // pred_check_branch
      %52 = sbr.rel (0) target = $region25
    $region24: #{tpu_custom_call.1} parent=1 // pred_region
      %53 = dma.done [#allocation3], 128
    $region25: #{tpu_custom_call.1} parent=1 // pred_fallthru
      _
    // Predicated region
    $region26: #{tpu_custom_call.1} parent=1 // pred_check
      _
    $region27: #{tpu_custom_call.1} parent=1 // pred_check_branch
      %55 = sbr.rel (0) target = $region29
    $region28: #{tpu_custom_call.1} parent=1 // pred_region
      %56 = dma.done [#allocation6], 2048
    $region29: #{tpu_custom_call.1} parent=1 // pred_fallthru
      _
    // Predicated region
    $region30: #{tpu_custom_call.1} parent=1 // pred_check
      _
    $region31: #{tpu_custom_call.1} parent=1 // pred_check_branch
      %58 = sbr.rel (0) target = $region33
    $region32: #{tpu_custom_call.1} parent=1 // pred_region
      %59 = dma.done [#allocation6], 2048
    $region33: #{tpu_custom_call.1} parent=1 // pred_fallthru
      _
    %v60 = vld [vmem:[#allocation2] sm:$0xff]
    %v61 = vld [vmem:[#allocation5] sm:$0xff]
    %v62 = vld [vmem:[#allocation5 + $0x8] sm:$0xff]
    %v63 = vld [vmem:[#allocation5 + $0x10] sm:$0xff]
    %v64 = vld [vmem:[#allocation5 + $0x18] sm:$0xff]
    %v65 = vld [vmem:[#allocation5 + $0x20] sm:$0xff]
    %v66 = vld [vmem:[#allocation5 + $0x28] sm:$0xff]
    %v67 = vld [vmem:[#allocation5 + $0x30] sm:$0xff]
    %v68 = vld [vmem:[#allocation5 + $0x38] sm:$0xff]
    %v69 = vld [vmem:[#allocation5 + $0x40] sm:$0xff]
    %v70 = vld [vmem:[#allocation5 + $0x48] sm:$0xff]
    %v71 = vld [vmem:[#allocation5 + $0x50] sm:$0xff]
    %v72 = vld [vmem:[#allocation5 + $0x58] sm:$0xff]
    %v73 = vld [vmem:[#allocation5 + $0x60] sm:$0xff]
    %v74 = vld [vmem:[#allocation5 + $0x68] sm:$0xff]
    %v75 = vld [vmem:[#allocation5 + $0x70] sm:$0xff]
    %v76 = vld [vmem:[#allocation5 + $0x78] sm:$0xff]
    %v77 = vld [vmem:[%s2] sm:$0x1]
    %v79 = vlaneseq
    %v80 = vshrl.u32 %v79, 7
    %v81 = vsub.s32 0, %v80
    %v82 = vrot.slane %v77, %v81
    %84 = vmatprep.subr.mxu0 0.0
    %85 = vmatpush1.msra.mxu0 %v61
    %86 = vmatprep.subr.mxu0 0.0
    %87 = vmatpush1.msra.mxu0 %v62
    %88 = vmatprep.subr.mxu0 0.0
    %89 = vmatpush1.msra.mxu0 %v63
    %90 = vmatprep.subr.mxu0 0.0
    %91 = vmatpush1.msra.mxu0 %v64
    %92 = vmatprep.subr.mxu0 0.0
    %93 = vmatpush1.msra.mxu0 %v65
    %94 = vmatprep.subr.mxu0 0.0
    %95 = vmatpush1.msra.mxu0 %v66
    %96 = vmatprep.subr.mxu0 0.0
    %97 = vmatpush1.msra.mxu0 %v67
    %98 = vmatprep.subr.mxu0 0.0
    %99 = vmatpush1.msra.mxu0 %v68
    %100 = vmatprep.subr.mxu0 0.0
    %101 = vmatpush1.msra.mxu0 %v69
    %102 = vmatprep.subr.mxu0 0.0
    %103 = vmatpush1.msra.mxu0 %v70
    %104 = vmatprep.subr.mxu0 0.0
    %105 = vmatpush1.msra.mxu0 %v71
    %106 = vmatprep.subr.mxu0 0.0
    %107 = vmatpush1.msra.mxu0 %v72
    %108 = vmatprep.subr.mxu0 0.0
    %109 = vmatpush1.msra.mxu0 %v73
    %110 = vmatprep.subr.mxu0 0.0
    %111 = vmatpush1.msra.mxu0 %v74
    %112 = vmatprep.subr.mxu0 0.0
    %113 = vmatpush1.msra.mxu0 %v75
    %114 = vmatprep.subr.mxu0 0.0
    %115 = vmatpush1.msra.mxu0 %v76
    %116 = vmatprep.subr.mxu0 0.0
    %117 = vmatpush1.msra.mxu0 0.0
    %118 = vmatprep.subr.mxu0 0.0
    %119 = vmatpush1.msra.mxu0 0.0
    %120 = vmatprep.subr.mxu0 0.0
    %121 = vmatpush1.msra.mxu0 0.0
    %122 = vmatprep.subr.mxu0 0.0
    %123 = vmatpush1.msra.mxu0 0.0
    %124 = vmatprep.subr.mxu0 0.0
    %125 = vmatpush1.msra.mxu0 0.0
    %126 = vmatprep.subr.mxu0 0.0
    %127 = vmatpush1.msra.mxu0 0.0
    %128 = vmatprep.subr.mxu0 0.0
    %129 = vmatpush1.msra.mxu0 0.0
    %130 = vmatprep.subr.mxu0 0.0
    %131 = vmatpush1.msra.mxu0 0.0
    %132 = vmatprep.subr.mxu0 0.0
    %133 = vmatpush1.msra.mxu0 0.0
    %134 = vmatprep.subr.mxu0 0.0
    %135 = vmatpush1.msra.mxu0 0.0
    %136 = vmatprep.subr.mxu0 0.0
    %137 = vmatpush1.msra.mxu0 0.0
    %138 = vmatprep.subr.mxu0 0.0
    %139 = vmatpush1.msra.mxu0 0.0
    %140 = vmatprep.subr.mxu0 0.0
    %141 = vmatpush1.msra.mxu0 0.0
    %142 = vmatprep.subr.mxu0 0.0
    %143 = vmatpush1.msra.mxu0 0.0
    %144 = vmatprep.subr.mxu0 0.0
    %145 = vmatpush1.msra.mxu0 0.0
    %146 = vmatprep.subr.mxu0 0.0
    %147 = vmatpush1.msra.mxu0 0.0
    %148 = vmatprep.mubr.f32.mxu0 0.0
    %149 = vmatmul.mubr.f32.gmra.mrb[0].mxu0 %v60
    %v150 = vpop.f32.mrb[0].mxu0
    %v151 = vadd.f32 %v82, %v150
    %v152 = vpop.f32.mrb[0].mxu0
    %153 = vdwg.mxu0
    %v154 = vtanh.pop %v151
    %v155 = vld [vmem:[#allocation7] sm:$0xff]
    %v156 = vld [vmem:[#allocation7 + $0x8] sm:$0xff]
    %v157 = vld [vmem:[#allocation7 + $0x10] sm:$0xff]
    %v158 = vld [vmem:[#allocation7 + $0x18] sm:$0xff]
    %v159 = vld [vmem:[#allocation7 + $0x20] sm:$0xff]
    %v160 = vld [vmem:[#allocation7 + $0x28] sm:$0xff]
    %v161 = vld [vmem:[#allocation7 + $0x30] sm:$0xff]
    %v162 = vld [vmem:[#allocation7 + $0x38] sm:$0xff]
    %v163 = vld [vmem:[#allocation7 + $0x40] sm:$0xff]
    %v164 = vld [vmem:[#allocation7 + $0x48] sm:$0xff]
    %v165 = vld [vmem:[#allocation7 + $0x50] sm:$0xff]
    %v166 = vld [vmem:[#allocation7 + $0x58] sm:$0xff]
    %v167 = vld [vmem:[#allocation7 + $0x60] sm:$0xff]
    %v168 = vld [vmem:[#allocation7 + $0x68] sm:$0xff]
    %v169 = vld [vmem:[#allocation7 + $0x70] sm:$0xff]
    %v170 = vld [vmem:[#allocation7 + $0x78] sm:$0xff]
    %v171 = vld [vmem:[%s4] sm:$0x1]
    %v173 = vlaneseq
    %v174 = vshrl.u32 %v173, 7
    %v175 = vsub.s32 0, %v174
    %v176 = vrot.slane %v171, %v175
    %178 = vmatprep.subr.mxu0 0.0
    %179 = vmatpush1.msra.mxu0 %v155
    %180 = vmatprep.subr.mxu0 0.0
    %181 = vmatpush1.msra.mxu0 %v156
    %182 = vmatprep.subr.mxu0 0.0
    %183 = vmatpush1.msra.mxu0 %v157
    %184 = vmatprep.subr.mxu0 0.0
    %185 = vmatpush1.msra.mxu0 %v158
    %186 = vmatprep.subr.mxu0 0.0
    %187 = vmatpush1.msra.mxu0 %v159
    %188 = vmatprep.subr.mxu0 0.0
    %189 = vmatpush1.msra.mxu0 %v160
    %190 = vmatprep.subr.mxu0 0.0
    %191 = vmatpush1.msra.mxu0 %v161
    %192 = vmatprep.subr.mxu0 0.0
    %193 = vmatpush1.msra.mxu0 %v162
    %194 = vmatprep.subr.mxu0 0.0
    %195 = vmatpush1.msra.mxu0 %v163
    %196 = vmatprep.subr.mxu0 0.0
    %197 = vmatpush1.msra.mxu0 %v164
    %198 = vmatprep.subr.mxu0 0.0
    %199 = vmatpush1.msra.mxu0 %v165
    %200 = vmatprep.subr.mxu0 0.0
    %201 = vmatpush1.msra.mxu0 %v166
    %202 = vmatprep.subr.mxu0 0.0
    %203 = vmatpush1.msra.mxu0 %v167
    %204 = vmatprep.subr.mxu0 0.0
    %205 = vmatpush1.msra.mxu0 %v168
    %206 = vmatprep.subr.mxu0 0.0
    %207 = vmatpush1.msra.mxu0 %v169
    %208 = vmatprep.subr.mxu0 0.0
    %209 = vmatpush1.msra.mxu0 %v170
    %210 = vmatprep.subr.mxu0 0.0
    %211 = vmatpush1.msra.mxu0 0.0
    %212 = vmatprep.subr.mxu0 0.0
    %213 = vmatpush1.msra.mxu0 0.0
    %214 = vmatprep.subr.mxu0 0.0
    %215 = vmatpush1.msra.mxu0 0.0
    %216 = vmatprep.subr.mxu0 0.0
    %217 = vmatpush1.msra.mxu0 0.0
    %218 = vmatprep.subr.mxu0 0.0
    %219 = vmatpush1.msra.mxu0 0.0
    %220 = vmatprep.subr.mxu0 0.0
    %221 = vmatpush1.msra.mxu0 0.0
    %222 = vmatprep.subr.mxu0 0.0
    %223 = vmatpush1.msra.mxu0 0.0
    %224 = vmatprep.subr.mxu0 0.0
    %225 = vmatpush1.msra.mxu0 0.0
    %226 = vmatprep.subr.mxu0 0.0
    %227 = vmatpush1.msra.mxu0 0.0
    %228 = vmatprep.subr.mxu0 0.0
    %229 = vmatpush1.msra.mxu0 0.0
    %230 = vmatprep.subr.mxu0 0.0
    %231 = vmatpush1.msra.mxu0 0.0
    %232 = vmatprep.subr.mxu0 0.0
    %233 = vmatpush1.msra.mxu0 0.0
    %234 = vmatprep.subr.mxu0 0.0
    %235 = vmatpush1.msra.mxu0 0.0
    %236 = vmatprep.subr.mxu0 0.0
    %237 = vmatpush1.msra.mxu0 0.0
    %238 = vmatprep.subr.mxu0 0.0
    %239 = vmatpush1.msra.mxu0 0.0
    %240 = vmatprep.subr.mxu0 0.0
    %241 = vmatpush1.msra.mxu0 0.0
    %242 = vmatprep.mubr.f32.mxu0 0.0
    %243 = vmatmul.mubr.f32.gmra.mrb[0].mxu0 %v154
    %v244 = vpop.f32.mrb[0].mxu0
    %v245 = vadd.f32 %v176, %v244
    %v246 = vpop.f32.mrb[0].mxu0
    %247 = vdwg.mxu0
    %v248 = vlaneseq
    %v249 = vand.u32 %v248, 127
    %vm250 = vcmp.ge.s32.totalorder %v249, 16
    %v251 = vmul.f32 %v245, 1.442695
    %v252 = vpow.pop %v251
    %v253 = vsel %vm250, %v252, %v245
    %254 = vst [vmem:[#allocation8] sm:$0xff] %v253
    // Predicated region
    $region34: #{tpu_custom_call.1} parent=1 // pred_check
      _
    $region35: #{tpu_custom_call.1} parent=1 // pred_check_branch
      %256 = sbr.rel (0) target = $region37
    $region36: #{tpu_custom_call.1} parent=1 // pred_region
      %s258 = ssub.s32 128, 128
      %259 = vsyncadd [#allocation4], %s258
      %s261 = sshll.u32 [#allocation8], 4
      %s262 = int_to_ptr.vmem [resolvable:$true] %s261
      %264 = dma.vmem_to_hbm [thread:$0]  %s262, 128, %s5, [#allocation4]
    $region37: #{tpu_custom_call.1} parent=1 // pred_fallthru
      _
    // Predicated region
    $region38: #{tpu_custom_call.1} parent=1 // pred_check
      _
    $region39: #{tpu_custom_call.1} parent=1 // pred_check_branch
      %266 = sbr.rel (0) target = $region41
    $region40: #{tpu_custom_call.1} parent=1 // pred_region
      %267 = dma.done [#allocation4], 128
    $region41: #{tpu_custom_call.1} parent=1 // pred_fallthru
      _
    %268 = vsyncpa [#allocation3], 1
    %269 = vsyncpa [#allocation6], 1
    %270 = vsyncpa [#allocation4], 1

</llo_original>
